<compile_context>
chip_gen: v7x
topology: tpu7x:2x2x1
jax: 0.10.0
libtpu: 0.0.40
codegen_flags: <defaults>
</compile_context>

<pallas_src>
import functools

import jax
import jax.numpy as jnp
from jax import lax
from jax.experimental import pallas as pl
from jax.experimental.pallas import tpu as pltpu

EPS = 1e-5      # torch.nn.LayerNorm default eps
LANE = 128
SUBLANE = 8


def _round_up(x, m):
    return (x + m - 1) // m * m


def _ln_relu_padded(v, gamma, beta, real_h, pad_count):
    """LayerNorm over the first `real_h` channels of a zero-padded [*, Hp] tile, then ReLU.

    Invariants: padded channels of `v` are exactly 0 (so padded columns of d equal -mu
    and their contribution to sum(d^2) is exactly pad_count * mu^2, removed algebraically
    below -- no iota/where mask); padded entries of gamma/beta are 0, so padded channels
    come out exactly 0 again (keeps the zero-padding invariant for the next matmul).
    Matches torch.nn.LayerNorm (biased variance).
    """
    mu = jnp.sum(v, axis=-1, keepdims=True) / real_h
    d = v - mu
    var = (jnp.sum(d * d, axis=-1, keepdims=True) - pad_count * (mu * mu)) / real_h
    t = d * lax.rsqrt(var + EPS)
    return jnp.maximum(t * gamma + beta, 0.0)


def _deeper_mlp_kernel(
    x_ref,        # [TN, Cin]            (node tile, mm_dtype)
    w_enc_ref,    # [Cin, Hp]            (resident, mm_dtype)
    b_enc_ref,    # [1, Hp]              (f32)
    w_lyr_ref,    # [L, Hp, Hp]          (mm_dtype)
    b_lyr_ref,    # [L, 1, Hp]           (f32)
    gamma_ref,    # [L, 1, Hp]           (f32)
    beta_ref,     # [L, 1, Hp]           (f32)
    w_head_ref,   # [Hp, Pout]           (g_lin || n_lin, zero padded to 128 lanes, mm_dtype)
    b_head_ref,   # [1, Pout]            (f32)
    g_part_ref,   # [1, 1, Pout]         per-tile partial max
    n_out_ref,    # [TN, Pout]           lane-dense output slab (f32)
    *,
    num_layers,
    real_hidden,
    pad_hidden,
    n_nodes,
    tile_n,
    mask_rows,
    mm_dtype,
):
    i = pl.program_id(0)

    # node_encoder (operands already in mm_dtype; f32 accumulation)
    h = jnp.dot(x_ref[...], w_enc_ref[...],
                preferred_element_type=jnp.float32) + b_enc_ref[...]

    # layers[0].conv applied directly (pre-norm scheme of the reference forward)
    h = jnp.dot(h.astype(mm_dtype), w_lyr_ref[0],
                preferred_element_type=jnp.float32) + b_lyr_ref[0]

    # DeepGCNLayer 'res+' blocks: h = h + conv(dropout(relu(norm(h))))
    def layer_body(l, h):
        t = _ln_relu_padded(h, gamma_ref[l], beta_ref[l], real_hidden, pad_hidden)
        t = jnp.dot(t.astype(mm_dtype), w_lyr_ref[l],
                    preferred_element_type=jnp.float32) + b_lyr_ref[l]
        return h + t

    if num_layers <= 8:
        # short stacks: fully unroll for LLO scheduling visibility
        for l in range(1, num_layers):
            h = layer_body(l, h)
    elif num_layers > 1:
        # deep stacks: dynamic weight indexing; unroll=2 recovers LN/MXU overlap
        # while bounding vreg live ranges and compile time
        h = lax.fori_loop(1, num_layers, layer_body, h, unroll=2)

    # trailing norm + act from layers[0]
    h = _ln_relu_padded(h, gamma_ref[0], beta_ref[0], real_hidden, pad_hidden)

    # fused heads: single lane-dense matmul; cols [0:O) = g_lin, [O:2O+1) = n_lin
    y = jnp.dot(h.astype(mm_dtype), w_head_ref[...],
                preferred_element_type=jnp.float32) + b_head_ref[...]

    # node head: store the whole 128-lane slab unmasked; wrapper slices real columns
    n_out_ref[...] = y

    # graph head: partial max over this tile's valid rows (padded rows -> -inf).
    # Row masking is only emitted when the node count isn't a tile multiple.
    if mask_rows:
        row = i * tile_n + lax.broadcasted_iota(jnp.int32, y.shape, 0)
        y = jnp.where(row < n_nodes, y, -jnp.inf)
    g_part_ref[...] = jnp.max(y, axis=0, keepdims=True)[None, :, :]


def init_params(key, in_channels, hidden_channels, out_channels, num_layers):
    """Deterministic synthetic parameters (shapes match the torch module)."""
    ks = jax.random.split(key, 8)
    f32 = jnp.float32
    scale = 0.1
    return {
        "w_enc": scale * jax.random.normal(ks[0], (in_channels, hidden_channels), f32),
        "b_enc": scale * jax.random.normal(ks[1], (1, hidden_channels), f32),
        "w_lyr": scale * jax.random.normal(
            ks[2], (num_layers, hidden_channels, hidden_channels), f32),
        "b_lyr": scale * jax.random.normal(ks[3], (num_layers, hidden_channels), f32),
        # LayerNorm affine params (torch inits gamma=1, beta=0)
        "gamma": jnp.ones((num_layers, hidden_channels), f32),
        "beta": jnp.zeros((num_layers, hidden_channels), f32),
        "w_g": scale * jax.random.normal(ks[4], (hidden_channels, out_channels), f32),
        "b_g": scale * jax.random.normal(ks[5], (1, out_channels), f32),
        "w_n": scale * jax.random.normal(ks[6], (hidden_channels, out_channels + 1), f32),
        "b_n": scale * jax.random.normal(ks[7], (1, out_channels + 1), f32),
    }


def _vmem_cap_bytes():
    """Chip-aware cap: ~85% of physical per-core VMEM (never exceed v7x's 64 MiB)."""
    try:
        info = pltpu.get_tpu_info()
        cap = getattr(info, "vmem_capacity_bytes", None)
        if cap:
            return int(cap * 0.85)
    except Exception:
        pass
    return 54 * 2**20   # conservative fallback: fits every generation incl. v7x


@functools.partial(jax.jit, static_argnames=("tile_n", "use_bf16"))
def deeper_mlp_forward(x, params, *, tile_n=512, use_bf16=True):
    if x.ndim > 2:
        x = jnp.squeeze(x, axis=0)
    n_nodes, in_ch = x.shape
    hidden = params["w_enc"].shape[1]
    out_ch = params["w_g"].shape[1]
    num_layers = params["w_lyr"].shape[0]
    f32 = jnp.float32
    mm_dtype = jnp.bfloat16 if use_bf16 else jnp.float32

    # ---- lane/sublane-aligned padded sizes --------------------------------
    h_pad = _round_up(hidden, LANE)                     # hidden width -> 128 multiple
    p_out = _round_up(2 * out_ch + 1, LANE)             # fused head width -> 128 multiple
    tn = min(_round_up(tile_n, SUBLANE), _round_up(max(n_nodes, 1), SUBLANE))
    n_pad = _round_up(n_nodes, tn)
    num_tiles = n_pad // tn

    # ---- zero-pad params once; matmul operands are pre-cast to mm_dtype here so
    #      no weight cast runs on the VPU inside the hot loop and the resident
    #      weight VMEM is halved on the bf16 path.  Padded rows/cols are 0, so
    #      padded channels of h stay exactly 0 through every layer; padded
    #      gamma/beta are 0. ----------------------------------------------------
    def pad2(a, r, c):
        return jnp.pad(a, ((0, r - a.shape[0]), (0, c - a.shape[1])))

    w_enc = pad2(params["w_enc"], in_ch, h_pad).astype(mm_dtype)
    b_enc = pad2(params["b_enc"].reshape(1, hidden), 1, h_pad)
    w_lyr = jnp.pad(params["w_lyr"],
                    ((0, 0), (0, h_pad - hidden), (0, h_pad - hidden))).astype(mm_dtype)
    b_lyr = jnp.pad(params["b_lyr"].reshape(num_layers, 1, hidden),
                    ((0, 0), (0, 0), (0, h_pad - hidden)))
    gamma = jnp.pad(params["gamma"].reshape(num_layers, 1, hidden),
                    ((0, 0), (0, 0), (0, h_pad - hidden)))
    beta = jnp.pad(params["beta"].reshape(num_layers, 1, hidden),
                   ((0, 0), (0, 0), (0, h_pad - hidden)))
    # fused heads: columns [0:O) = g_lin, [O:2O+1) = n_lin, rest zero
    w_head = pad2(jnp.concatenate([params["w_g"], params["w_n"]], axis=1),
                  h_pad, p_out).astype(mm_dtype)
    b_head = pad2(jnp.concatenate(
        [params["b_g"].reshape(1, -1), params["b_n"].reshape(1, -1)], axis=1), 1, p_out)

    x_p = jnp.pad(x.astype(f32), ((0, n_pad - n_nodes), (0, 0))).astype(mm_dtype)

    # ---- explicit VMEM budget -----------------------------------------------
    # Resident weights counted 2x in case Mosaic double-buffers the constant-index
    # blocks; streamed tiles are double-buffered by the pipeline.
    wb = 2 if use_bf16 else 4
    resident = 2 * (wb * (w_enc.size + w_lyr.size + w_head.size)
                    + 4 * (b_enc.size + b_lyr.size + gamma.size + beta.size + b_head.size))
    streamed = 2 * (wb * tn * in_ch + 4 * tn * p_out + 4 * p_out)
    workspace = 8 * 4 * tn * h_pad                       # live intermediates headroom
    vmem_limit = int(min(_vmem_cap_bytes(),
                         max(32 * 2**20, int(1.5 * (resident + streamed + workspace)))))

    kernel = functools.partial(
        _deeper_mlp_kernel,
        num_layers=num_layers, real_hidden=hidden, pad_hidden=h_pad - hidden,
        n_nodes=n_nodes, tile_n=tn, mask_rows=(n_pad != n_nodes), mm_dtype=mm_dtype)

    def whole(a):
        # full-array block with a constant index_map -> stays resident in VMEM
        return pl.BlockSpec(a.shape, lambda i, nd=a.ndim: (0,) * nd)

    g_part, n_out_p = pl.pallas_call(
        kernel,
        out_shape=(
            jax.ShapeDtypeStruct((num_tiles, 1, p_out), f32),         # per-tile partial max
            jax.ShapeDtypeStruct((n_pad, p_out), f32),                # lane-dense node output
        ),
        grid_spec=pltpu.PrefetchScalarGridSpec(
            num_scalar_prefetch=0,
            grid=(num_tiles,),
            in_specs=[
                pl.BlockSpec((tn, in_ch), lambda i: (i, 0)),          # x: tiled over nodes
                whole(w_enc), whole(b_enc),
                whole(w_lyr), whole(b_lyr),
                whole(gamma), whole(beta),
                whole(w_head), whole(b_head),
            ],
            out_specs=[
                pl.BlockSpec((1, 1, p_out), lambda i: (i, 0, 0)),
                pl.BlockSpec((tn, p_out), lambda i: (i, 0)),
            ],
        ),
        compiler_params=pltpu.CompilerParams(
            dimension_semantics=("parallel",),        # node tiles are independent (megacore)
            vmem_limit_bytes=vmem_limit,
        ),
    )(x_p, w_enc, b_enc, w_lyr, b_lyr, gamma, beta, w_head, b_head)

    # finalize graph-head max across tiles; slice real columns / rows back out
    g_out = jnp.max(g_part, axis=(0, 1))[:out_ch]                    # [O]
    n_out = n_out_p[:n_nodes, out_ch:2 * out_ch + 1]                 # [N, O+1]
    return g_out, n_out


def _reference_forward(x, params):
    """Pure-JAX f32 reference (mirrors the torch module in eval mode)."""
    if x.ndim > 2:
        x = jnp.squeeze(x, axis=0)

    def ln_relu(v, g, b):
        mu = jnp.mean(v, axis=-1, keepdims=True)
        var = jnp.mean((v - mu) * (v - mu), axis=-1, keepdims=True)
        return jnp.maximum((v - mu) * lax.rsqrt(var + EPS) * g + b, 0.0)

    h = x @ params["w_enc"] + params["b_enc"]
    h = h @ params["w_lyr"][0] + params["b_lyr"][0]
    num_layers = params["w_lyr"].shape[0]
    for i in range(1, num_layers):
        t = ln_relu(h, params["gamma"][i], params["beta"][i])
        h = h + t @ params["w_lyr"][i] + params["b_lyr"][i]
    h = ln_relu(h, params["gamma"][0], params["beta"][0])
    g_out = jnp.max(h @ params["w_g"] + params["b_g"], axis=0)
    n_out = h @ params["w_n"] + params["b_n"]
    return g_out, n_out


if __name__ == "__main__":
    # ---- config 1: toy config (single tile, unrolled layers, exercises the
    #      leading-dim squeeze path) ----------------------------------------------
    in_ch, hidden, out_ch, num_layers, n_nodes = 4, 32, 8, 3, 16
    k_x, k_p = jax.random.split(jax.random.PRNGKey(0))
    x = jax.random.normal(k_x, (1, n_nodes, in_ch), jnp.float32)
    params = init_params(k_p, in_ch, hidden, out_ch, num_layers)
    g_ref, n_ref = _reference_forward(x, params)

    # exact-f32 operand path
    g_out, n_out = deeper_mlp_forward(x, params, use_bf16=False)
    jax.block_until_ready((g_out, n_out))
    assert g_out.shape == (out_ch,)
    assert n_out.shape == (n_nodes, out_ch + 1)
    assert jnp.allclose(g_out, g_ref, atol=1e-5, rtol=1e-5)
    assert jnp.allclose(n_out, n_ref, atol=1e-5, rtol=1e-5)

    # default path: bf16 MXU operands (pre-cast in wrapper); f32 accumulation / LN.
    g_bf, n_bf = deeper_mlp_forward(x, params)
    jax.block_until_ready((g_bf, n_bf))
    assert jnp.allclose(g_bf, g_ref, atol=5e-2, rtol=5e-2)
    assert jnp.allclose(n_bf, n_ref, atol=5e-2, rtol=5e-2)

    # ---- config 2: ragged N (row masking for the max), multiple node tiles,
    #      deep stack -> fori_loop(unroll=2) layer path with dynamic weight indexing
    in_ch2, hidden2, out_ch2, num_layers2, n_nodes2 = 6, 32, 8, 10, 37
    k_x2, k_p2 = jax.random.split(jax.random.PRNGKey(1))
    x2 = jax.random.normal(k_x2, (n_nodes2, in_ch2), jnp.float32)
    params2 = init_params(k_p2, in_ch2, hidden2, out_ch2, num_layers2)

    g2, n2 = deeper_mlp_forward(x2, params2, tile_n=16, use_bf16=False)
    jax.block_until_ready((g2, n2))
    g2_ref, n2_ref = _reference_forward(x2, params2)
    assert g2.shape == (out_ch2,)
    assert n2.shape == (n_nodes2, out_ch2 + 1)
    assert jnp.allclose(g2, g2_ref, atol=5e-5, rtol=5e-5)
    assert jnp.allclose(n2, n2_ref, atol=5e-5, rtol=5e-5)

    print("KERNEL_OK")
</pallas_src>

<mosaic_0001>
module attributes {stable_mosaic.version = 11 : i64} {
  func.func @_deeper_mlp_kernel(%arg0: i32, %arg1: memref<16x4xf32, #tpu.memory_space<vmem>>, %arg2: memref<4x128xf32, #tpu.memory_space<vmem>>, %arg3: memref<1x128xf32, #tpu.memory_space<vmem>>, %arg4: memref<3x128x128xf32, #tpu.memory_space<vmem>>, %arg5: memref<3x1x128xf32, #tpu.memory_space<vmem>>, %arg6: memref<3x1x128xf32, #tpu.memory_space<vmem>>, %arg7: memref<3x1x128xf32, #tpu.memory_space<vmem>>, %arg8: memref<128x128xf32, #tpu.memory_space<vmem>>, %arg9: memref<1x128xf32, #tpu.memory_space<vmem>>, %arg10: memref<1x1x128xf32, #tpu.memory_space<vmem>>, %arg11: memref<16x128xf32, #tpu.memory_space<vmem>>) attributes {dimension_semantics = [#tpu.dimension_semantics<parallel>], iteration_bounds = array<i64: 1>, scalar_prefetch = 0 : i64, scratch_operands = 0 : i64, tpu.core_type = #tpu.core_type<tc>, window_params = [{transform_indices = @transform_0, window_bounds = array<i64: 16, 4>}, {pipeline_mode = #tpu.pipeline_mode<synchronous>, transform_indices = @transform_1, window_bounds = array<i64: 4, 128>}, {pipeline_mode = #tpu.pipeline_mode<synchronous>, transform_indices = @transform_2, window_bounds = array<i64: 1, 128>}, {pipeline_mode = #tpu.pipeline_mode<synchronous>, transform_indices = @transform_3, window_bounds = array<i64: 3, 128, 128>}, {pipeline_mode = #tpu.pipeline_mode<synchronous>, transform_indices = @transform_4, window_bounds = array<i64: 3, 1, 128>}, {pipeline_mode = #tpu.pipeline_mode<synchronous>, transform_indices = @transform_5, window_bounds = array<i64: 3, 1, 128>}, {pipeline_mode = #tpu.pipeline_mode<synchronous>, transform_indices = @transform_6, window_bounds = array<i64: 3, 1, 128>}, {pipeline_mode = #tpu.pipeline_mode<synchronous>, transform_indices = @transform_7, window_bounds = array<i64: 128, 128>}, {pipeline_mode = #tpu.pipeline_mode<synchronous>, transform_indices = @transform_8, window_bounds = array<i64: 1, 128>}, {transform_indices = @transform_9, window_bounds = array<i64: 1, 1, 128>}, {transform_indices = @transform_10, window_bounds = array<i64: 16, 128>}]} {
    %c0 = arith.constant 0 : index
    %c0_0 = arith.constant 0 : index
    %0 = vector.load %arg1[%c0, %c0_0] : memref<16x4xf32, #tpu.memory_space<vmem>>, vector<16x4xf32>
    %c0_1 = arith.constant 0 : index
    %c0_2 = arith.constant 0 : index
    %1 = vector.load %arg2[%c0_1, %c0_2] : memref<4x128xf32, #tpu.memory_space<vmem>>, vector<4x128xf32>
    %cst = arith.constant dense<0.000000e+00> : vector<16x128xf32>
    %2 = tpu.matmul %0, %1, %cst {dimension_numbers = #tpu.dot_dimension_numbers<[1], [0], [0], [1], [0, 0, 1, 1], [], []>} : vector<16x4xf32>, vector<4x128xf32>, vector<16x128xf32> -> vector<16x128xf32>
    %c0_3 = arith.constant 0 : index
    %c0_4 = arith.constant 0 : index
    %3 = vector.load %arg3[%c0_3, %c0_4] : memref<1x128xf32, #tpu.memory_space<vmem>>, vector<1x128xf32>
    %4 = vector.broadcast %3 : vector<1x128xf32> to vector<16x128xf32>
    %5 = arith.addf %2, %4 : vector<16x128xf32>
    %c0_5 = arith.constant 0 : index
    %c0_6 = arith.constant 0 : index
    %c0_7 = arith.constant 0 : index
    %6 = vector.load %arg4[%c0_5, %c0_6, %c0_7] : memref<3x128x128xf32, #tpu.memory_space<vmem>>, vector<1x128x128xf32>
    %7 = vector.shape_cast %6 : vector<1x128x128xf32> to vector<128x128xf32>
    %cst_8 = arith.constant dense<0.000000e+00> : vector<16x128xf32>
    %8 = tpu.matmul %5, %7, %cst_8 {dimension_numbers = #tpu.dot_dimension_numbers<[1], [0], [0], [1], [0, 0, 1, 1], [], []>} : vector<16x128xf32>, vector<128x128xf32>, vector<16x128xf32> -> vector<16x128xf32>
    %c0_9 = arith.constant 0 : index
    %c0_10 = arith.constant 0 : index
    %c0_11 = arith.constant 0 : index
    %9 = vector.load %arg5[%c0_9, %c0_10, %c0_11] : memref<3x1x128xf32, #tpu.memory_space<vmem>>, vector<1x1x128xf32>
    %10 = vector.shape_cast %9 : vector<1x1x128xf32> to vector<1x128xf32>
    %11 = vector.broadcast %10 : vector<1x128xf32> to vector<16x128xf32>
    %12 = arith.addf %8, %11 : vector<16x128xf32>
    %c1 = arith.constant 1 : index
    %c0_12 = arith.constant 0 : index
    %c0_13 = arith.constant 0 : index
    %13 = vector.load %arg6[%c1, %c0_12, %c0_13] : memref<3x1x128xf32, #tpu.memory_space<vmem>>, vector<1x1x128xf32>
    %14 = vector.shape_cast %13 : vector<1x1x128xf32> to vector<1x128xf32>
    %c1_14 = arith.constant 1 : index
    %c0_15 = arith.constant 0 : index
    %c0_16 = arith.constant 0 : index
    %15 = vector.load %arg7[%c1_14, %c0_15, %c0_16] : memref<3x1x128xf32, #tpu.memory_space<vmem>>, vector<1x1x128xf32>
    %16 = vector.shape_cast %15 : vector<1x1x128xf32> to vector<1x128xf32>
    %cst_17 = arith.constant dense<0.000000e+00> : vector<16xf32>
    %17 = vector.multi_reduction <add>, %12, %cst_17 [1] : vector<16x128xf32> to vector<16xf32>
    %18 = vector.shape_cast %17 : vector<16xf32> to vector<16x1xf32>
    %cst_18 = arith.constant 3.200000e+01 : f32
    %19 = vector.broadcast %cst_18 : f32 to vector<16x1xf32>
    %20 = arith.divf %18, %19 : vector<16x1xf32>
    %21 = vector.broadcast %20 : vector<16x1xf32> to vector<16x128xf32>
    %22 = arith.subf %12, %21 : vector<16x128xf32>
    %23 = arith.mulf %22, %22 : vector<16x128xf32>
    %cst_19 = arith.constant dense<0.000000e+00> : vector<16xf32>
    %24 = vector.multi_reduction <add>, %23, %cst_19 [1] : vector<16x128xf32> to vector<16xf32>
    %25 = vector.shape_cast %24 : vector<16xf32> to vector<16x1xf32>
    %26 = arith.mulf %20, %20 : vector<16x1xf32>
    %cst_20 = arith.constant 9.600000e+01 : f32
    %27 = vector.broadcast %cst_20 : f32 to vector<16x1xf32>
    %28 = arith.mulf %27, %26 : vector<16x1xf32>
    %29 = arith.subf %25, %28 : vector<16x1xf32>
    %cst_21 = arith.constant 3.200000e+01 : f32
    %30 = vector.broadcast %cst_21 : f32 to vector<16x1xf32>
    %31 = arith.divf %29, %30 : vector<16x1xf32>
    %cst_22 = arith.constant 9.99999974E-6 : f32
    %32 = vector.broadcast %cst_22 : f32 to vector<16x1xf32>
    %33 = arith.addf %31, %32 : vector<16x1xf32>
    %34 = math.rsqrt %33 : vector<16x1xf32>
    %35 = vector.broadcast %34 : vector<16x1xf32> to vector<16x128xf32>
    %36 = arith.mulf %22, %35 : vector<16x128xf32>
    %37 = vector.broadcast %14 : vector<1x128xf32> to vector<16x128xf32>
    %38 = arith.mulf %36, %37 : vector<16x128xf32>
    %39 = vector.broadcast %16 : vector<1x128xf32> to vector<16x128xf32>
    %40 = arith.addf %38, %39 : vector<16x128xf32>
    %cst_23 = arith.constant 0.000000e+00 : f32
    %41 = vector.broadcast %cst_23 : f32 to vector<16x128xf32>
    %42 = arith.maximumf %40, %41 : vector<16x128xf32>
    %c1_24 = arith.constant 1 : index
    %c0_25 = arith.constant 0 : index
    %c0_26 = arith.constant 0 : index
    %43 = vector.load %arg4[%c1_24, %c0_25, %c0_26] : memref<3x128x128xf32, #tpu.memory_space<vmem>>, vector<1x128x128xf32>
    %44 = vector.shape_cast %43 : vector<1x128x128xf32> to vector<128x128xf32>
    %cst_27 = arith.constant dense<0.000000e+00> : vector<16x128xf32>
    %45 = tpu.matmul %42, %44, %cst_27 {dimension_numbers = #tpu.dot_dimension_numbers<[1], [0], [0], [1], [0, 0, 1, 1], [], []>} : vector<16x128xf32>, vector<128x128xf32>, vector<16x128xf32> -> vector<16x128xf32>
    %c1_28 = arith.constant 1 : index
    %c0_29 = arith.constant 0 : index
    %c0_30 = arith.constant 0 : index
    %46 = vector.load %arg5[%c1_28, %c0_29, %c0_30] : memref<3x1x128xf32, #tpu.memory_space<vmem>>, vector<1x1x128xf32>
    %47 = vector.shape_cast %46 : vector<1x1x128xf32> to vector<1x128xf32>
    %48 = vector.broadcast %47 : vector<1x128xf32> to vector<16x128xf32>
    %49 = arith.addf %45, %48 : vector<16x128xf32>
    %50 = arith.addf %12, %49 : vector<16x128xf32>
    %c2 = arith.constant 2 : index
    %c0_31 = arith.constant 0 : index
    %c0_32 = arith.constant 0 : index
    %51 = vector.load %arg6[%c2, %c0_31, %c0_32] : memref<3x1x128xf32, #tpu.memory_space<vmem>>, vector<1x1x128xf32>
    %52 = vector.shape_cast %51 : vector<1x1x128xf32> to vector<1x128xf32>
    %c2_33 = arith.constant 2 : index
    %c0_34 = arith.constant 0 : index
    %c0_35 = arith.constant 0 : index
    %53 = vector.load %arg7[%c2_33, %c0_34, %c0_35] : memref<3x1x128xf32, #tpu.memory_space<vmem>>, vector<1x1x128xf32>
    %54 = vector.shape_cast %53 : vector<1x1x128xf32> to vector<1x128xf32>
    %cst_36 = arith.constant dense<0.000000e+00> : vector<16xf32>
    %55 = vector.multi_reduction <add>, %50, %cst_36 [1] : vector<16x128xf32> to vector<16xf32>
    %56 = vector.shape_cast %55 : vector<16xf32> to vector<16x1xf32>
    %cst_37 = arith.constant 3.200000e+01 : f32
    %57 = vector.broadcast %cst_37 : f32 to vector<16x1xf32>
    %58 = arith.divf %56, %57 : vector<16x1xf32>
    %59 = vector.broadcast %58 : vector<16x1xf32> to vector<16x128xf32>
    %60 = arith.subf %50, %59 : vector<16x128xf32>
    %61 = arith.mulf %60, %60 : vector<16x128xf32>
    %cst_38 = arith.constant dense<0.000000e+00> : vector<16xf32>
    %62 = vector.multi_reduction <add>, %61, %cst_38 [1] : vector<16x128xf32> to vector<16xf32>
    %63 = vector.shape_cast %62 : vector<16xf32> to vector<16x1xf32>
    %64 = arith.mulf %58, %58 : vector<16x1xf32>
    %cst_39 = arith.constant 9.600000e+01 : f32
    %65 = vector.broadcast %cst_39 : f32 to vector<16x1xf32>
    %66 = arith.mulf %65, %64 : vector<16x1xf32>
    %67 = arith.subf %63, %66 : vector<16x1xf32>
    %cst_40 = arith.constant 3.200000e+01 : f32
    %68 = vector.broadcast %cst_40 : f32 to vector<16x1xf32>
    %69 = arith.divf %67, %68 : vector<16x1xf32>
    %cst_41 = arith.constant 9.99999974E-6 : f32
    %70 = vector.broadcast %cst_41 : f32 to vector<16x1xf32>
    %71 = arith.addf %69, %70 : vector<16x1xf32>
    %72 = math.rsqrt %71 : vector<16x1xf32>
    %73 = vector.broadcast %72 : vector<16x1xf32> to vector<16x128xf32>
    %74 = arith.mulf %60, %73 : vector<16x128xf32>
    %75 = vector.broadcast %52 : vector<1x128xf32> to vector<16x128xf32>
    %76 = arith.mulf %74, %75 : vector<16x128xf32>
    %77 = vector.broadcast %54 : vector<1x128xf32> to vector<16x128xf32>
    %78 = arith.addf %76, %77 : vector<16x128xf32>
    %cst_42 = arith.constant 0.000000e+00 : f32
    %79 = vector.broadcast %cst_42 : f32 to vector<16x128xf32>
    %80 = arith.maximumf %78, %79 : vector<16x128xf32>
    %c2_43 = arith.constant 2 : index
    %c0_44 = arith.constant 0 : index
    %c0_45 = arith.constant 0 : index
    %81 = vector.load %arg4[%c2_43, %c0_44, %c0_45] : memref<3x128x128xf32, #tpu.memory_space<vmem>>, vector<1x128x128xf32>
    %82 = vector.shape_cast %81 : vector<1x128x128xf32> to vector<128x128xf32>
    %cst_46 = arith.constant dense<0.000000e+00> : vector<16x128xf32>
    %83 = tpu.matmul %80, %82, %cst_46 {dimension_numbers = #tpu.dot_dimension_numbers<[1], [0], [0], [1], [0, 0, 1, 1], [], []>} : vector<16x128xf32>, vector<128x128xf32>, vector<16x128xf32> -> vector<16x128xf32>
    %c2_47 = arith.constant 2 : index
    %c0_48 = arith.constant 0 : index
    %c0_49 = arith.constant 0 : index
    %84 = vector.load %arg5[%c2_47, %c0_48, %c0_49] : memref<3x1x128xf32, #tpu.memory_space<vmem>>, vector<1x1x128xf32>
    %85 = vector.shape_cast %84 : vector<1x1x128xf32> to vector<1x128xf32>
    %86 = vector.broadcast %85 : vector<1x128xf32> to vector<16x128xf32>
    %87 = arith.addf %83, %86 : vector<16x128xf32>
    %88 = arith.addf %50, %87 : vector<16x128xf32>
    %c0_50 = arith.constant 0 : index
    %c0_51 = arith.constant 0 : index
    %c0_52 = arith.constant 0 : index
    %89 = vector.load %arg6[%c0_50, %c0_51, %c0_52] : memref<3x1x128xf32, #tpu.memory_space<vmem>>, vector<1x1x128xf32>
    %90 = vector.shape_cast %89 : vector<1x1x128xf32> to vector<1x128xf32>
    %c0_53 = arith.constant 0 : index
    %c0_54 = arith.constant 0 : index
    %c0_55 = arith.constant 0 : index
    %91 = vector.load %arg7[%c0_53, %c0_54, %c0_55] : memref<3x1x128xf32, #tpu.memory_space<vmem>>, vector<1x1x128xf32>
    %92 = vector.shape_cast %91 : vector<1x1x128xf32> to vector<1x128xf32>
    %cst_56 = arith.constant dense<0.000000e+00> : vector<16xf32>
    %93 = vector.multi_reduction <add>, %88, %cst_56 [1] : vector<16x128xf32> to vector<16xf32>
    %94 = vector.shape_cast %93 : vector<16xf32> to vector<16x1xf32>
    %cst_57 = arith.constant 3.200000e+01 : f32
    %95 = vector.broadcast %cst_57 : f32 to vector<16x1xf32>
    %96 = arith.divf %94, %95 : vector<16x1xf32>
    %97 = vector.broadcast %96 : vector<16x1xf32> to vector<16x128xf32>
    %98 = arith.subf %88, %97 : vector<16x128xf32>
    %99 = arith.mulf %98, %98 : vector<16x128xf32>
    %cst_58 = arith.constant dense<0.000000e+00> : vector<16xf32>
    %100 = vector.multi_reduction <add>, %99, %cst_58 [1] : vector<16x128xf32> to vector<16xf32>
    %101 = vector.shape_cast %100 : vector<16xf32> to vector<16x1xf32>
    %102 = arith.mulf %96, %96 : vector<16x1xf32>
    %cst_59 = arith.constant 9.600000e+01 : f32
    %103 = vector.broadcast %cst_59 : f32 to vector<16x1xf32>
    %104 = arith.mulf %103, %102 : vector<16x1xf32>
    %105 = arith.subf %101, %104 : vector<16x1xf32>
    %cst_60 = arith.constant 3.200000e+01 : f32
    %106 = vector.broadcast %cst_60 : f32 to vector<16x1xf32>
    %107 = arith.divf %105, %106 : vector<16x1xf32>
    %cst_61 = arith.constant 9.99999974E-6 : f32
    %108 = vector.broadcast %cst_61 : f32 to vector<16x1xf32>
    %109 = arith.addf %107, %108 : vector<16x1xf32>
    %110 = math.rsqrt %109 : vector<16x1xf32>
    %111 = vector.broadcast %110 : vector<16x1xf32> to vector<16x128xf32>
    %112 = arith.mulf %98, %111 : vector<16x128xf32>
    %113 = vector.broadcast %90 : vector<1x128xf32> to vector<16x128xf32>
    %114 = arith.mulf %112, %113 : vector<16x128xf32>
    %115 = vector.broadcast %92 : vector<1x128xf32> to vector<16x128xf32>
    %116 = arith.addf %114, %115 : vector<16x128xf32>
    %cst_62 = arith.constant 0.000000e+00 : f32
    %117 = vector.broadcast %cst_62 : f32 to vector<16x128xf32>
    %118 = arith.maximumf %116, %117 : vector<16x128xf32>
    %c0_63 = arith.constant 0 : index
    %c0_64 = arith.constant 0 : index
    %119 = vector.load %arg8[%c0_63, %c0_64] : memref<128x128xf32, #tpu.memory_space<vmem>>, vector<128x128xf32>
    %cst_65 = arith.constant dense<0.000000e+00> : vector<16x128xf32>
    %120 = tpu.matmul %118, %119, %cst_65 {dimension_numbers = #tpu.dot_dimension_numbers<[1], [0], [0], [1], [0, 0, 1, 1], [], []>} : vector<16x128xf32>, vector<128x128xf32>, vector<16x128xf32> -> vector<16x128xf32>
    %c0_66 = arith.constant 0 : index
    %c0_67 = arith.constant 0 : index
    %121 = vector.load %arg9[%c0_66, %c0_67] : memref<1x128xf32, #tpu.memory_space<vmem>>, vector<1x128xf32>
    %122 = vector.broadcast %121 : vector<1x128xf32> to vector<16x128xf32>
    %123 = arith.addf %120, %122 : vector<16x128xf32>
    %c0_68 = arith.constant 0 : index
    %c0_69 = arith.constant 0 : index
    %124 = vector.load %arg11[%c0_68, %c0_69] : memref<16x128xf32, #tpu.memory_space<vmem>>, vector<16x128xf32>
    tpu.vector_store %arg11[%c0_68, %c0_69], %123 {strides = array<i32>} : memref<16x128xf32, #tpu.memory_space<vmem>>, vector<16x128xf32>,
    %cst_70 = arith.constant dense<0xFF800000> : vector<128xf32>
    %125 = vector.multi_reduction <maximumf>, %123, %cst_70 [0] : vector<16x128xf32> to vector<128xf32>
    %126 = vector.shape_cast %125 : vector<128xf32> to vector<1x128xf32>
    %127 = vector.shape_cast %126 : vector<1x128xf32> to vector<1x1x128xf32>
    %c0_71 = arith.constant 0 : index
    %c0_72 = arith.constant 0 : index
    %c0_73 = arith.constant 0 : index
    %128 = vector.load %arg10[%c0_71, %c0_72, %c0_73] : memref<1x1x128xf32, #tpu.memory_space<vmem>>, vector<1x1x128xf32>
    tpu.vector_store %arg10[%c0_71, %c0_72, %c0_73], %127 {strides = array<i32>} : memref<1x1x128xf32, #tpu.memory_space<vmem>>, vector<1x1x128xf32>,
    return
  }
  func.func @transform_0(%arg0: i32) -> (i32, i32) {
    %c0_i32 = arith.constant 0 : i32
    %c0_i32_0 = arith.constant 0 : i32
    return %arg0, %c0_i32 : i32, i32
  }
  func.func @transform_1(%arg0: i32) -> (i32, i32) {
    %c0_i32 = arith.constant 0 : i32
    %c0_i32_0 = arith.constant 0 : i32
    %c0_i32_1 = arith.constant 0 : i32
    return %c0_i32, %c0_i32_0 : i32, i32
  }
  func.func @transform_2(%arg0: i32) -> (i32, i32) {
    %c0_i32 = arith.constant 0 : i32
    %c0_i32_0 = arith.constant 0 : i32
    %c0_i32_1 = arith.constant 0 : i32
    return %c0_i32, %c0_i32_0 : i32, i32
  }
  func.func @transform_3(%arg0: i32) -> (i32, i32, i32) {
    %c0_i32 = arith.constant 0 : i32
    %c0_i32_0 = arith.constant 0 : i32
    %c0_i32_1 = arith.constant 0 : i32
    %c0_i32_2 = arith.constant 0 : i32
    return %c0_i32, %c0_i32_0, %c0_i32_1 : i32, i32, i32
  }
  func.func @transform_4(%arg0: i32) -> (i32, i32, i32) {
    %c0_i32 = arith.constant 0 : i32
    %c0_i32_0 = arith.constant 0 : i32
    %c0_i32_1 = arith.constant 0 : i32
    %c0_i32_2 = arith.constant 0 : i32
    return %c0_i32, %c0_i32_0, %c0_i32_1 : i32, i32, i32
  }
  func.func @transform_5(%arg0: i32) -> (i32, i32, i32) {
    %c0_i32 = arith.constant 0 : i32
    %c0_i32_0 = arith.constant 0 : i32
    %c0_i32_1 = arith.constant 0 : i32
    %c0_i32_2 = arith.constant 0 : i32
    return %c0_i32, %c0_i32_0, %c0_i32_1 : i32, i32, i32
  }
  func.func @transform_6(%arg0: i32) -> (i32, i32, i32) {
    %c0_i32 = arith.constant 0 : i32
    %c0_i32_0 = arith.constant 0 : i32
    %c0_i32_1 = arith.constant 0 : i32
    %c0_i32_2 = arith.constant 0 : i32
    return %c0_i32, %c0_i32_0, %c0_i32_1 : i32, i32, i32
  }
  func.func @transform_7(%arg0: i32) -> (i32, i32) {
    %c0_i32 = arith.constant 0 : i32
    %c0_i32_0 = arith.constant 0 : i32
    %c0_i32_1 = arith.constant 0 : i32
    return %c0_i32, %c0_i32_0 : i32, i32
  }
  func.func @transform_8(%arg0: i32) -> (i32, i32) {
    %c0_i32 = arith.constant 0 : i32
    %c0_i32_0 = arith.constant 0 : i32
    %c0_i32_1 = arith.constant 0 : i32
    return %c0_i32, %c0_i32_0 : i32, i32
  }
  func.func @transform_9(%arg0: i32) -> (i32, i32, i32) {
    %c0_i32 = arith.constant 0 : i32
    %c0_i32_0 = arith.constant 0 : i32
    %c0_i32_1 = arith.constant 0 : i32
    return %arg0, %c0_i32, %c0_i32_0 : i32, i32, i32
  }
  func.func @transform_10(%arg0: i32) -> (i32, i32) {
    %c0_i32 = arith.constant 0 : i32
    %c0_i32_0 = arith.constant 0 : i32
    return %arg0, %c0_i32 : i32, i32
  }
}

</mosaic_0001>

<llo_original>
// kernel: deeper_mlp_forward.1
$region0: #{deeper_mlp_forward.1}
  #allocation0 [shape = 'u32[]', space=smem, size = 0x4, offset = 0x4, fixed_abs, tag = 'smem constant byte address 0x4 - core index']
  #allocation1 [shape = 'u32[144,128]{1,0:T(1,128)}', space=vmem, size = 0x12000, scoped, tag = 'internal scratch']
  %s0 = inlined_call_operand.vmem [shape: f32[16,4], index: 0, kind: input, shape index: {}]
  %s1 = inlined_call_operand.vmem [shape: f32[4,128], index: 1, kind: input, shape index: {}]
  %s2 = inlined_call_operand.vmem [shape: f32[1,128], index: 2, kind: input, shape index: {}]
  %s3 = inlined_call_operand.vmem [shape: f32[3,128,128], index: 3, kind: input, shape index: {}]
  %s4 = inlined_call_operand.vmem [shape: f32[3,1,128], index: 4, kind: input, shape index: {}]
  %s5 = inlined_call_operand.vmem [shape: f32[3,1,128], index: 5, kind: input, shape index: {}]
  %s6 = inlined_call_operand.vmem [shape: f32[3,1,128], index: 6, kind: input, shape index: {}]
  %s7 = inlined_call_operand.vmem [shape: f32[128,128], index: 7, kind: input, shape index: {}]
  %s8 = inlined_call_operand.vmem [shape: f32[1,128], index: 8, kind: input, shape index: {}]
  %s9 = inlined_call_operand.vmem [shape: f32[1,1,128], index: 9, kind: output, shape index: {0}]
  %s10 = inlined_call_operand.vmem [shape: f32[16,128], index: 10, kind: output, shape index: {1}]
  %11 = xla_tuple %s9, %s10
  %s12 = sld [smem:[#allocation0]]
  $region54: #{deeper_mlp_forward.1} parent=0
    _
  %s14 = ssub.s32 1, %s12
  %s15 = scalar_select 0, %s14, %s12
  // Predicated region
  $region2: #{deeper_mlp_forward.1} parent=0 // pred_check
    _
  $region3: #{deeper_mlp_forward.1} parent=0 // pred_check_branch
    %17 = sbr.rel (0) target = $region5
  $region4: #{deeper_mlp_forward.1} parent=0 // pred_region
    _
  $region5: #{deeper_mlp_forward.1} parent=0 // pred_fallthru
    _
  // Predicated region
  $region6: #{deeper_mlp_forward.1} parent=0 // pred_check
    _
  $region7: #{deeper_mlp_forward.1} parent=0 // pred_check_branch
    %19 = sbr.rel (0) target = $region9
  $region8: #{deeper_mlp_forward.1} parent=0 // pred_region
    _
  $region9: #{deeper_mlp_forward.1} parent=0 // pred_fallthru
    _
  // Predicated region
  $region10: #{deeper_mlp_forward.1} parent=0 // pred_check
    _
  $region11: #{deeper_mlp_forward.1} parent=0 // pred_check_branch
    %21 = sbr.rel (0) target = $region13
  $region12: #{deeper_mlp_forward.1} parent=0 // pred_region
    _
  $region13: #{deeper_mlp_forward.1} parent=0 // pred_fallthru
    _
  // Predicated region
  $region14: #{deeper_mlp_forward.1} parent=0 // pred_check
    _
  $region15: #{deeper_mlp_forward.1} parent=0 // pred_check_branch
    %23 = sbr.rel (0) target = $region17
  $region16: #{deeper_mlp_forward.1} parent=0 // pred_region
    _
  $region17: #{deeper_mlp_forward.1} parent=0 // pred_fallthru
    _
  // Predicated region
  $region18: #{deeper_mlp_forward.1} parent=0 // pred_check
    _
  $region19: #{deeper_mlp_forward.1} parent=0 // pred_check_branch
    %25 = sbr.rel (0) target = $region21
  $region20: #{deeper_mlp_forward.1} parent=0 // pred_region
    _
  $region21: #{deeper_mlp_forward.1} parent=0 // pred_fallthru
    _
  // Predicated region
  $region22: #{deeper_mlp_forward.1} parent=0 // pred_check
    _
  $region23: #{deeper_mlp_forward.1} parent=0 // pred_check_branch
    %27 = sbr.rel (0) target = $region25
  $region24: #{deeper_mlp_forward.1} parent=0 // pred_region
    _
  $region25: #{deeper_mlp_forward.1} parent=0 // pred_fallthru
    _
  // Predicated region
  $region26: #{deeper_mlp_forward.1} parent=0 // pred_check
    _
  $region27: #{deeper_mlp_forward.1} parent=0 // pred_check_branch
    %29 = sbr.rel (0) target = $region29
  $region28: #{deeper_mlp_forward.1} parent=0 // pred_region
    _
  $region29: #{deeper_mlp_forward.1} parent=0 // pred_fallthru
    _
  // Predicated region
  $region30: #{deeper_mlp_forward.1} parent=0 // pred_check
    _
  $region31: #{deeper_mlp_forward.1} parent=0 // pred_check_branch
    %31 = sbr.rel (0) target = $region33
  $region32: #{deeper_mlp_forward.1} parent=0 // pred_region
    _
  $region33: #{deeper_mlp_forward.1} parent=0 // pred_fallthru
    _
  // Predicated region
  $region34: #{deeper_mlp_forward.1} parent=0 // pred_check
    _
  $region35: #{deeper_mlp_forward.1} parent=0 // pred_check_branch
    %33 = sbr.rel (0) target = $region37
  $region36: #{deeper_mlp_forward.1} parent=0 // pred_region
    _
  $region37: #{deeper_mlp_forward.1} parent=0 // pred_fallthru
    _
  %v34 = vld [vmem:[%s0] sm:$0xff]
  %v35 = vld [vmem:[%s0 + $0x8] sm:$0xff]
  %v36 = vld [vmem:[%s1] sm:$0xf]
  %v37 = vld [vmem:[%s2] sm:$0x1]
  %v39 = vlaneseq
  %v40 = vshrl.u32 %v39, 7
  %v41 = vsub.s32 0, %v40
  %v42 = vrot.slane %v37, %v41
  %vm44 = vcmask 31744
  %v46 = vsel %vm44, %v34, 0
  %v49 = vsel %vm44, %v35, 0
  %vm51 = vcmask 1043456
  %v53 = vsel %vm51, %v36, 0
  %55 = vmatprep.subr.mxu0 0.0
  %56 = vmatpush1.msra.mxu0 %v53
  %57 = vmatprep.subr.mxu0 0.0
  %58 = vmatpush1.msra.mxu0 0.0
  %59 = vmatprep.subr.mxu0 0.0
  %60 = vmatpush1.msra.mxu0 0.0
  %61 = vmatprep.subr.mxu0 0.0
  %62 = vmatpush1.msra.mxu0 0.0
  %63 = vmatprep.subr.mxu0 0.0
  %64 = vmatpush1.msra.mxu0 0.0
  %65 = vmatprep.subr.mxu0 0.0
  %66 = vmatpush1.msra.mxu0 0.0
  %67 = vmatprep.subr.mxu0 0.0
  %68 = vmatpush1.msra.mxu0 0.0
  %69 = vmatprep.subr.mxu0 0.0
  %70 = vmatpush1.msra.mxu0 0.0
  %71 = vmatprep.subr.mxu0 0.0
  %72 = vmatpush1.msra.mxu0 0.0
  %73 = vmatprep.subr.mxu0 0.0
  %74 = vmatpush1.msra.mxu0 0.0
  %75 = vmatprep.subr.mxu0 0.0
  %76 = vmatpush1.msra.mxu0 0.0
  %77 = vmatprep.subr.mxu0 0.0
  %78 = vmatpush1.msra.mxu0 0.0
  %79 = vmatprep.subr.mxu0 0.0
  %80 = vmatpush1.msra.mxu0 0.0
  %81 = vmatprep.subr.mxu0 0.0
  %82 = vmatpush1.msra.mxu0 0.0
  %83 = vmatprep.subr.mxu0 0.0
  %84 = vmatpush1.msra.mxu0 0.0
  %85 = vmatprep.subr.mxu0 0.0
  %86 = vmatpush1.msra.mxu0 0.0
  %87 = vmatprep.subr.mxu0 0.0
  %88 = vmatpush1.msra.mxu0 0.0
  %89 = vmatprep.subr.mxu0 0.0
  %90 = vmatpush1.msra.mxu0 0.0
  %91 = vmatprep.subr.mxu0 0.0
  %92 = vmatpush1.msra.mxu0 0.0
  %93 = vmatprep.subr.mxu0 0.0
  %94 = vmatpush1.msra.mxu0 0.0
  %95 = vmatprep.subr.mxu0 0.0
  %96 = vmatpush1.msra.mxu0 0.0
  %97 = vmatprep.subr.mxu0 0.0
  %98 = vmatpush1.msra.mxu0 0.0
  %99 = vmatprep.subr.mxu0 0.0
  %100 = vmatpush1.msra.mxu0 0.0
  %101 = vmatprep.subr.mxu0 0.0
  %102 = vmatpush1.msra.mxu0 0.0
  %103 = vmatprep.subr.mxu0 0.0
  %104 = vmatpush1.msra.mxu0 0.0
  %105 = vmatprep.subr.mxu0 0.0
  %106 = vmatpush1.msra.mxu0 0.0
  %107 = vmatprep.subr.mxu0 0.0
  %108 = vmatpush1.msra.mxu0 0.0
  %109 = vmatprep.subr.mxu0 0.0
  %110 = vmatpush1.msra.mxu0 0.0
  %111 = vmatprep.subr.mxu0 0.0
  %112 = vmatpush1.msra.mxu0 0.0
  %113 = vmatprep.subr.mxu0 0.0
  %114 = vmatpush1.msra.mxu0 0.0
  %115 = vmatprep.subr.mxu0 0.0
  %116 = vmatpush1.msra.mxu0 0.0
  %117 = vmatprep.subr.mxu0 0.0
  %118 = vmatpush1.msra.mxu0 0.0
  %119 = vmatprep.mubr.f32.mxu0 0.0
  %120 = vmatmul.mubr.f32.gmra.mrb[0].mxu0 %v46
  %v121 = vpop.f32.mrb[0].mxu0
  %v122 = vadd.f32 %v42, %v121
  %v123 = vpop.f32.mrb[0].mxu0
  %124 = vmatprep.mubr.f32.mxu0 0.0
  %125 = vmatmul.mubr.f32.gmra.mrb[0].mxu0 %v49
  %v126 = vpop.f32.mrb[0].mxu0
  %v127 = vadd.f32 %v42, %v126
  %v128 = vpop.f32.mrb[0].mxu0
  %129 = vdwg.mxu0
  %v130 = vld [vmem:[%s3] sm:$0xff]
  %v131 = vld [vmem:[%s3 + $0x8] sm:$0xff]
  %v132 = vld [vmem:[%s3 + $0x10] sm:$0xff]
  %v133 = vld [vmem:[%s3 + $0x18] sm:$0xff]
  %v134 = vld [vmem:[%s3 + $0x20] sm:$0xff]
  %v135 = vld [vmem:[%s3 + $0x28] sm:$0xff]
  %v136 = vld [vmem:[%s3 + $0x30] sm:$0xff]
  %v137 = vld [vmem:[%s3 + $0x38] sm:$0xff]
  %v138 = vld [vmem:[%s3 + $0x40] sm:$0xff]
  %v139 = vld [vmem:[%s3 + $0x48] sm:$0xff]
  %v140 = vld [vmem:[%s3 + $0x50] sm:$0xff]
  %v141 = vld [vmem:[%s3 + $0x58] sm:$0xff]
  %v142 = vld [vmem:[%s3 + $0x60] sm:$0xff]
  %v143 = vld [vmem:[%s3 + $0x68] sm:$0xff]
  %v144 = vld [vmem:[%s3 + $0x70] sm:$0xff]
  %v145 = vld [vmem:[%s3 + $0x78] sm:$0xff]
  %v146 = vld [vmem:[%s4] sm:$0x1]
  %v148 = vlaneseq
  %v149 = vshrl.u32 %v148, 7
  %v150 = vsub.s32 0, %v149
  %v151 = vrot.slane %v146, %v150
  %153 = vmatprep.subr.mxu0 0.0
  %154 = vmatpush1.msra.mxu0 %v130
  %155 = vmatprep.subr.mxu0 0.0
  %156 = vmatpush1.msra.mxu0 %v131
  %157 = vmatprep.subr.mxu0 0.0
  %158 = vmatpush1.msra.mxu0 %v132
  %159 = vmatprep.subr.mxu0 0.0
  %160 = vmatpush1.msra.mxu0 %v133
  %161 = vmatprep.subr.mxu0 0.0
  %162 = vmatpush1.msra.mxu0 %v134
  %163 = vmatprep.subr.mxu0 0.0
  %164 = vmatpush1.msra.mxu0 %v135
  %165 = vmatprep.subr.mxu0 0.0
  %166 = vmatpush1.msra.mxu0 %v136
  %167 = vmatprep.subr.mxu0 0.0
  %168 = vmatpush1.msra.mxu0 %v137
  %169 = vmatprep.subr.mxu0 0.0
  %170 = vmatpush1.msra.mxu0 %v138
  %171 = vmatprep.subr.mxu0 0.0
  %172 = vmatpush1.msra.mxu0 %v139
  %173 = vmatprep.subr.mxu0 0.0
  %174 = vmatpush1.msra.mxu0 %v140
  %175 = vmatprep.subr.mxu0 0.0
  %176 = vmatpush1.msra.mxu0 %v141
  %177 = vmatprep.subr.mxu0 0.0
  %178 = vmatpush1.msra.mxu0 %v142
  %179 = vmatprep.subr.mxu0 0.0
  %180 = vmatpush1.msra.mxu0 %v143
  %181 = vmatprep.subr.mxu0 0.0
  %182 = vmatpush1.msra.mxu0 %v144
  %183 = vmatprep.subr.mxu0 0.0
  %184 = vmatpush1.msra.mxu0 %v145
  %185 = vmatprep.subr.mxu0 0.0
  %186 = vmatpush1.msra.mxu0 0.0
  %187 = vmatprep.subr.mxu0 0.0
  %188 = vmatpush1.msra.mxu0 0.0
  %189 = vmatprep.subr.mxu0 0.0
  %190 = vmatpush1.msra.mxu0 0.0
  %191 = vmatprep.subr.mxu0 0.0
  %192 = vmatpush1.msra.mxu0 0.0
  %193 = vmatprep.subr.mxu0 0.0
  %194 = vmatpush1.msra.mxu0 0.0
  %195 = vmatprep.subr.mxu0 0.0
  %196 = vmatpush1.msra.mxu0 0.0
  %197 = vmatprep.subr.mxu0 0.0
  %198 = vmatpush1.msra.mxu0 0.0
  %199 = vmatprep.subr.mxu0 0.0
  %200 = vmatpush1.msra.mxu0 0.0
  %201 = vmatprep.subr.mxu0 0.0
  %202 = vmatpush1.msra.mxu0 0.0
  %203 = vmatprep.subr.mxu0 0.0
  %204 = vmatpush1.msra.mxu0 0.0
  %205 = vmatprep.subr.mxu0 0.0
  %206 = vmatpush1.msra.mxu0 0.0
  %207 = vmatprep.subr.mxu0 0.0
  %208 = vmatpush1.msra.mxu0 0.0
  %209 = vmatprep.subr.mxu0 0.0
  %210 = vmatpush1.msra.mxu0 0.0
  %211 = vmatprep.subr.mxu0 0.0
  %212 = vmatpush1.msra.mxu0 0.0
  %213 = vmatprep.subr.mxu0 0.0
  %214 = vmatpush1.msra.mxu0 0.0
  %215 = vmatprep.subr.mxu0 0.0
  %216 = vmatpush1.msra.mxu0 0.0
  %217 = vmatprep.mubr.f32.mxu0 0.0
  %218 = vmatmul.mubr.f32.gmra.mrb[0].mxu0 %v122
  %v219 = vpop.f32.mrb[0].mxu0
  %v220 = vadd.f32 %v151, %v219
  %v221 = vpop.f32.mrb[0].mxu0
  %222 = vmatprep.mubr.f32.mxu0 0.0
  %223 = vmatmul.mubr.f32.gmra.mrb[0].mxu0 %v127
  %v224 = vpop.f32.mrb[0].mxu0
  %v225 = vadd.f32 %v151, %v224
  %v226 = vpop.f32.mrb[0].mxu0
  %227 = vdwg.mxu0
  %s228 = scalar_lea.vmem %s5, 1
  %v229 = vld [vmem:[%s228] sm:$0x1]
  %s230 = scalar_lea.vmem %s6, 1
  %v231 = vld [vmem:[%s230] sm:$0x1]
  %232 = vadd.xlane.f32.xlu0 %v220
  %v233 = vpop.xlane.xlu0 %232
  %234 = vadd.xlane.f32.xlu0 %v225
  %v235 = vpop.xlane.xlu0 %234
  %v236 = vrcp.pop 32.0
  %v237 = vmul.f32 %v233, %v236
  %v238 = vmul.f32 %v235, %v236
  %v239 = vsub.f32 %v220, %v237
  %v240 = vsub.f32 %v225, %v238
  %v241 = vmul.f32 %v239, %v239
  %v242 = vmul.f32 %v240, %v240
  %243 = vadd.xlane.f32.xlu0 %v241
  %v244 = vpop.xlane.xlu0 %243
  %245 = vadd.xlane.f32.xlu0 %v242
  %v246 = vpop.xlane.xlu0 %245
  %v247 = vmul.f32 %v237, %v237
  %v248 = vmul.f32 %v238, %v238
  %v249 = vmul.f32 %v247, 96.0
  %v250 = vmul.f32 %v248, 96.0
  %v251 = vsub.f32 %v244, %v249
  %v252 = vsub.f32 %v246, %v250
  %v253 = vmul.f32 %v251, %v236
  %v254 = vmul.f32 %v252, %v236
  %v255 = vadd.f32 %v253, 1e-05
  %v256 = vadd.f32 %v254, 1e-05
  %v257 = vrsqrt.pop %v255
  %v258 = vrsqrt.pop %v256
  %v259 = vmul.f32 %v239, %v257
  %v260 = vmul.f32 %v240, %v258
  %v262 = vlaneseq
  %v263 = vshrl.u32 %v262, 7
  %v264 = vsub.s32 0, %v263
  %v265 = vrot.slane %v229, %v264
  %v267 = vmul.f32 %v259, %v265
  %v268 = vmul.f32 %v260, %v265
  %v270 = vlaneseq
  %v271 = vshrl.u32 %v270, 7
  %v272 = vsub.s32 0, %v271
  %v273 = vrot.slane %v231, %v272
  %v275 = vadd.f32 %v267, %v273
  %v276 = vadd.f32 %v268, %v273
  %v277 = vmax.f32 %v275, 0.0
  %v278 = vmax.f32 %v276, 0.0
  %s279 = scalar_lea.vmem %s3, 128
  %v280 = vld [vmem:[%s279] sm:$0xff]
  %v281 = vld [vmem:[%s279 + $0x8] sm:$0xff]
  %v282 = vld [vmem:[%s279 + $0x10] sm:$0xff]
  %v283 = vld [vmem:[%s279 + $0x18] sm:$0xff]
  %v284 = vld [vmem:[%s279 + $0x20] sm:$0xff]
  %v285 = vld [vmem:[%s279 + $0x28] sm:$0xff]
  %v286 = vld [vmem:[%s279 + $0x30] sm:$0xff]
  %v287 = vld [vmem:[%s279 + $0x38] sm:$0xff]
  %v288 = vld [vmem:[%s279 + $0x40] sm:$0xff]
  %v289 = vld [vmem:[%s279 + $0x48] sm:$0xff]
  %v290 = vld [vmem:[%s279 + $0x50] sm:$0xff]
  %v291 = vld [vmem:[%s279 + $0x58] sm:$0xff]
  %v292 = vld [vmem:[%s279 + $0x60] sm:$0xff]
  %v293 = vld [vmem:[%s279 + $0x68] sm:$0xff]
  %v294 = vld [vmem:[%s279 + $0x70] sm:$0xff]
  %v295 = vld [vmem:[%s279 + $0x78] sm:$0xff]
  %s296 = scalar_lea.vmem %s4, 1
  %v297 = vld [vmem:[%s296] sm:$0x1]
  %v299 = vlaneseq
  %v300 = vshrl.u32 %v299, 7
  %v301 = vsub.s32 0, %v300
  %v302 = vrot.slane %v297, %v301
  %304 = vmatprep.subr.mxu0 0.0
  %305 = vmatpush1.msra.mxu0 %v280
  %306 = vmatprep.subr.mxu0 0.0
  %307 = vmatpush1.msra.mxu0 %v281
  %308 = vmatprep.subr.mxu0 0.0
  %309 = vmatpush1.msra.mxu0 %v282
  %310 = vmatprep.subr.mxu0 0.0
  %311 = vmatpush1.msra.mxu0 %v283
  %312 = vmatprep.subr.mxu0 0.0
  %313 = vmatpush1.msra.mxu0 %v284
  %314 = vmatprep.subr.mxu0 0.0
  %315 = vmatpush1.msra.mxu0 %v285
  %316 = vmatprep.subr.mxu0 0.0
  %317 = vmatpush1.msra.mxu0 %v286
  %318 = vmatprep.subr.mxu0 0.0
  %319 = vmatpush1.msra.mxu0 %v287
  %320 = vmatprep.subr.mxu0 0.0
  %321 = vmatpush1.msra.mxu0 %v288
  %322 = vmatprep.subr.mxu0 0.0
  %323 = vmatpush1.msra.mxu0 %v289
  %324 = vmatprep.subr.mxu0 0.0
  %325 = vmatpush1.msra.mxu0 %v290
  %326 = vmatprep.subr.mxu0 0.0
  %327 = vmatpush1.msra.mxu0 %v291
  %328 = vmatprep.subr.mxu0 0.0
  %329 = vmatpush1.msra.mxu0 %v292
  %330 = vmatprep.subr.mxu0 0.0
  %331 = vmatpush1.msra.mxu0 %v293
  %332 = vmatprep.subr.mxu0 0.0
  %333 = vmatpush1.msra.mxu0 %v294
  %334 = vmatprep.subr.mxu0 0.0
  %335 = vmatpush1.msra.mxu0 %v295
  %336 = vmatprep.subr.mxu0 0.0
  %337 = vmatpush1.msra.mxu0 0.0
  %338 = vmatprep.subr.mxu0 0.0
  %339 = vmatpush1.msra.mxu0 0.0
  %340 = vmatprep.subr.mxu0 0.0
  %341 = vmatpush1.msra.mxu0 0.0
  %342 = vmatprep.subr.mxu0 0.0
  %343 = vmatpush1.msra.mxu0 0.0
  %344 = vmatprep.subr.mxu0 0.0
  %345 = vmatpush1.msra.mxu0 0.0
  %346 = vmatprep.subr.mxu0 0.0
  %347 = vmatpush1.msra.mxu0 0.0
  %348 = vmatprep.subr.mxu0 0.0
  %349 = vmatpush1.msra.mxu0 0.0
  %350 = vmatprep.subr.mxu0 0.0
  %351 = vmatpush1.msra.mxu0 0.0
  %352 = vmatprep.subr.mxu0 0.0
  %353 = vmatpush1.msra.mxu0 0.0
  %354 = vmatprep.subr.mxu0 0.0
  %355 = vmatpush1.msra.mxu0 0.0
  %356 = vmatprep.subr.mxu0 0.0
  %357 = vmatpush1.msra.mxu0 0.0
  %358 = vmatprep.subr.mxu0 0.0
  %359 = vmatpush1.msra.mxu0 0.0
  %360 = vmatprep.subr.mxu0 0.0
  %361 = vmatpush1.msra.mxu0 0.0
  %362 = vmatprep.subr.mxu0 0.0
  %363 = vmatpush1.msra.mxu0 0.0
  %364 = vmatprep.subr.mxu0 0.0
  %365 = vmatpush1.msra.mxu0 0.0
  %366 = vmatprep.subr.mxu0 0.0
  %367 = vmatpush1.msra.mxu0 0.0
  %368 = vmatprep.mubr.f32.mxu0 0.0
  %369 = vmatmul.mubr.f32.gmra.mrb[0].mxu0 %v277
  %v370 = vpop.f32.mrb[0].mxu0
  %v371 = vadd.f32 %v302, %v370
  %v372 = vpop.f32.mrb[0].mxu0
  %373 = vmatprep.mubr.f32.mxu0 0.0
  %374 = vmatmul.mubr.f32.gmra.mrb[0].mxu0 %v278
  %v375 = vpop.f32.mrb[0].mxu0
  %v376 = vadd.f32 %v302, %v375
  %v377 = vpop.f32.mrb[0].mxu0
  %378 = vdwg.mxu0
  %v379 = vadd.f32 %v220, %v371
  %v380 = vadd.f32 %v225, %v376
  %s381 = scalar_lea.vmem %s5, 2
  %v382 = vld [vmem:[%s381] sm:$0x1]
  %s383 = scalar_lea.vmem %s6, 2
  %v384 = vld [vmem:[%s383] sm:$0x1]
  %385 = vadd.xlane.f32.xlu0 %v379
  %v386 = vpop.xlane.xlu0 %385
  %387 = vadd.xlane.f32.xlu0 %v380
  %v388 = vpop.xlane.xlu0 %387
  %v389 = vmul.f32 %v386, %v236
  %v390 = vmul.f32 %v388, %v236
  %v391 = vsub.f32 %v379, %v389
  %v392 = vsub.f32 %v380, %v390
  %v393 = vmul.f32 %v391, %v391
  %v394 = vmul.f32 %v392, %v392
  %395 = vadd.xlane.f32.xlu0 %v393
  %v396 = vpop.xlane.xlu0 %395
  %397 = vadd.xlane.f32.xlu0 %v394
  %v398 = vpop.xlane.xlu0 %397
  %v399 = vmul.f32 %v389, %v389
  %v400 = vmul.f32 %v390, %v390
  %v401 = vmul.f32 %v399, 96.0
  %v402 = vmul.f32 %v400, 96.0
  %v403 = vsub.f32 %v396, %v401
  %v404 = vsub.f32 %v398, %v402
  %v405 = vmul.f32 %v403, %v236
  %v406 = vmul.f32 %v404, %v236
  %v407 = vadd.f32 %v405, 1e-05
  %v408 = vadd.f32 %v406, 1e-05
  %v409 = vrsqrt.pop %v407
  %v410 = vrsqrt.pop %v408
  %v411 = vmul.f32 %v391, %v409
  %v412 = vmul.f32 %v392, %v410
  %v414 = vlaneseq
  %v415 = vshrl.u32 %v414, 7
  %v416 = vsub.s32 0, %v415
  %v417 = vrot.slane %v382, %v416
  %v419 = vmul.f32 %v411, %v417
  %v420 = vmul.f32 %v412, %v417
  %v422 = vlaneseq
  %v423 = vshrl.u32 %v422, 7
  %v424 = vsub.s32 0, %v423
  %v425 = vrot.slane %v384, %v424
  %v427 = vadd.f32 %v419, %v425
  %v428 = vadd.f32 %v420, %v425
  %v429 = vmax.f32 %v427, 0.0
  %v430 = vmax.f32 %v428, 0.0
  %s431 = scalar_lea.vmem %s3, 256
  %v432 = vld [vmem:[%s431] sm:$0xff]
  %v433 = vld [vmem:[%s431 + $0x8] sm:$0xff]
  %v434 = vld [vmem:[%s431 + $0x10] sm:$0xff]
  %v435 = vld [vmem:[%s431 + $0x18] sm:$0xff]
  %v436 = vld [vmem:[%s431 + $0x20] sm:$0xff]
  %v437 = vld [vmem:[%s431 + $0x28] sm:$0xff]
  %v438 = vld [vmem:[%s431 + $0x30] sm:$0xff]
  %v439 = vld [vmem:[%s431 + $0x38] sm:$0xff]
  %v440 = vld [vmem:[%s431 + $0x40] sm:$0xff]
  %v441 = vld [vmem:[%s431 + $0x48] sm:$0xff]
  %v442 = vld [vmem:[%s431 + $0x50] sm:$0xff]
  %v443 = vld [vmem:[%s431 + $0x58] sm:$0xff]
  %v444 = vld [vmem:[%s431 + $0x60] sm:$0xff]
  %v445 = vld [vmem:[%s431 + $0x68] sm:$0xff]
  %v446 = vld [vmem:[%s431 + $0x70] sm:$0xff]
  %v447 = vld [vmem:[%s431 + $0x78] sm:$0xff]
  %s448 = scalar_lea.vmem %s4, 2
  %v449 = vld [vmem:[%s448] sm:$0x1]
  %v451 = vlaneseq
  %v452 = vshrl.u32 %v451, 7
  %v453 = vsub.s32 0, %v452
  %v454 = vrot.slane %v449, %v453
  %456 = vmatprep.subr.mxu0 0.0
  %457 = vmatpush1.msra.mxu0 %v432
  %458 = vmatprep.subr.mxu0 0.0
  %459 = vmatpush1.msra.mxu0 %v433
  %460 = vmatprep.subr.mxu0 0.0
  %461 = vmatpush1.msra.mxu0 %v434
  %462 = vmatprep.subr.mxu0 0.0
  %463 = vmatpush1.msra.mxu0 %v435
  %464 = vmatprep.subr.mxu0 0.0
  %465 = vmatpush1.msra.mxu0 %v436
  %466 = vmatprep.subr.mxu0 0.0
  %467 = vmatpush1.msra.mxu0 %v437
  %468 = vmatprep.subr.mxu0 0.0
  %469 = vmatpush1.msra.mxu0 %v438
  %470 = vmatprep.subr.mxu0 0.0
  %471 = vmatpush1.msra.mxu0 %v439
  %472 = vmatprep.subr.mxu0 0.0
  %473 = vmatpush1.msra.mxu0 %v440
  %474 = vmatprep.subr.mxu0 0.0
  %475 = vmatpush1.msra.mxu0 %v441
  %476 = vmatprep.subr.mxu0 0.0
  %477 = vmatpush1.msra.mxu0 %v442
  %478 = vmatprep.subr.mxu0 0.0
  %479 = vmatpush1.msra.mxu0 %v443
  %480 = vmatprep.subr.mxu0 0.0
  %481 = vmatpush1.msra.mxu0 %v444
  %482 = vmatprep.subr.mxu0 0.0
  %483 = vmatpush1.msra.mxu0 %v445
  %484 = vmatprep.subr.mxu0 0.0
  %485 = vmatpush1.msra.mxu0 %v446
  %486 = vmatprep.subr.mxu0 0.0
  %487 = vmatpush1.msra.mxu0 %v447
  %488 = vmatprep.subr.mxu0 0.0
  %489 = vmatpush1.msra.mxu0 0.0
  %490 = vmatprep.subr.mxu0 0.0
  %491 = vmatpush1.msra.mxu0 0.0
  %492 = vmatprep.subr.mxu0 0.0
  %493 = vmatpush1.msra.mxu0 0.0
  %494 = vmatprep.subr.mxu0 0.0
  %495 = vmatpush1.msra.mxu0 0.0
  %496 = vmatprep.subr.mxu0 0.0
  %497 = vmatpush1.msra.mxu0 0.0
  %498 = vmatprep.subr.mxu0 0.0
  %499 = vmatpush1.msra.mxu0 0.0
  %500 = vmatprep.subr.mxu0 0.0
  %501 = vmatpush1.msra.mxu0 0.0
  %502 = vmatprep.subr.mxu0 0.0
  %503 = vmatpush1.msra.mxu0 0.0
  %504 = vmatprep.subr.mxu0 0.0
  %505 = vmatpush1.msra.mxu0 0.0
  %506 = vmatprep.subr.mxu0 0.0
  %507 = vmatpush1.msra.mxu0 0.0
  %508 = vmatprep.subr.mxu0 0.0
  %509 = vmatpush1.msra.mxu0 0.0
  %510 = vmatprep.subr.mxu0 0.0
  %511 = vmatpush1.msra.mxu0 0.0
  %512 = vmatprep.subr.mxu0 0.0
  %513 = vmatpush1.msra.mxu0 0.0
  %514 = vmatprep.subr.mxu0 0.0
  %515 = vmatpush1.msra.mxu0 0.0
  %516 = vmatprep.subr.mxu0 0.0
  %517 = vmatpush1.msra.mxu0 0.0
  %518 = vmatprep.subr.mxu0 0.0
  %519 = vmatpush1.msra.mxu0 0.0
  %520 = vmatprep.mubr.f32.mxu0 0.0
  %521 = vmatmul.mubr.f32.gmra.mrb[0].mxu0 %v429
  %v522 = vpop.f32.mrb[0].mxu0
  %v523 = vadd.f32 %v454, %v522
  %v524 = vpop.f32.mrb[0].mxu0
  %525 = vmatprep.mubr.f32.mxu0 0.0
  %526 = vmatmul.mubr.f32.gmra.mrb[0].mxu0 %v430
  %v527 = vpop.f32.mrb[0].mxu0
  %v528 = vadd.f32 %v454, %v527
  %v529 = vpop.f32.mrb[0].mxu0
  %530 = vdwg.mxu0
  %v531 = vadd.f32 %v379, %v523
  %v532 = vadd.f32 %v380, %v528
  %v533 = vld [vmem:[%s5] sm:$0x1]
  %v534 = vld [vmem:[%s6] sm:$0x1]
  %535 = vadd.xlane.f32.xlu0 %v531
  %v536 = vpop.xlane.xlu0 %535
  %537 = vadd.xlane.f32.xlu0 %v532
  %v538 = vpop.xlane.xlu0 %537
  %v539 = vmul.f32 %v536, %v236
  %v540 = vmul.f32 %v538, %v236
  %v541 = vsub.f32 %v531, %v539
  %v542 = vsub.f32 %v532, %v540
  %v543 = vmul.f32 %v541, %v541
  %v544 = vmul.f32 %v542, %v542
  %545 = vadd.xlane.f32.xlu0 %v543
  %v546 = vpop.xlane.xlu0 %545
  %547 = vadd.xlane.f32.xlu0 %v544
  %v548 = vpop.xlane.xlu0 %547
  %v549 = vmul.f32 %v539, %v539
  %v550 = vmul.f32 %v540, %v540
  %v551 = vmul.f32 %v549, 96.0
  %v552 = vmul.f32 %v550, 96.0
  %v553 = vsub.f32 %v546, %v551
  %v554 = vsub.f32 %v548, %v552
  %v555 = vmul.f32 %v553, %v236
  %v556 = vmul.f32 %v554, %v236
  %v557 = vadd.f32 %v555, 1e-05
  %v558 = vadd.f32 %v556, 1e-05
  %v559 = vrsqrt.pop %v557
  %v560 = vrsqrt.pop %v558
  %v561 = vmul.f32 %v541, %v559
  %v562 = vmul.f32 %v542, %v560
  %v564 = vlaneseq
  %v565 = vshrl.u32 %v564, 7
  %v566 = vsub.s32 0, %v565
  %v567 = vrot.slane %v533, %v566
  %v569 = vmul.f32 %v561, %v567
  %v570 = vmul.f32 %v562, %v567
  %v572 = vlaneseq
  %v573 = vshrl.u32 %v572, 7
  %v574 = vsub.s32 0, %v573
  %v575 = vrot.slane %v534, %v574
  %v577 = vadd.f32 %v569, %v575
  %v578 = vadd.f32 %v570, %v575
  %v579 = vmax.f32 %v577, 0.0
  %v580 = vmax.f32 %v578, 0.0
  %v581 = vld [vmem:[%s7] sm:$0xff]
  %v582 = vld [vmem:[%s7 + $0x8] sm:$0xff]
  %v583 = vld [vmem:[%s7 + $0x10] sm:$0xff]
  %v584 = vld [vmem:[%s7 + $0x18] sm:$0xff]
  %v585 = vld [vmem:[%s7 + $0x20] sm:$0xff]
  %v586 = vld [vmem:[%s7 + $0x28] sm:$0xff]
  %v587 = vld [vmem:[%s7 + $0x30] sm:$0xff]
  %v588 = vld [vmem:[%s7 + $0x38] sm:$0xff]
  %v589 = vld [vmem:[%s7 + $0x40] sm:$0xff]
  %v590 = vld [vmem:[%s7 + $0x48] sm:$0xff]
  %v591 = vld [vmem:[%s7 + $0x50] sm:$0xff]
  %v592 = vld [vmem:[%s7 + $0x58] sm:$0xff]
  %v593 = vld [vmem:[%s7 + $0x60] sm:$0xff]
  %v594 = vld [vmem:[%s7 + $0x68] sm:$0xff]
  %v595 = vld [vmem:[%s7 + $0x70] sm:$0xff]
  %v596 = vld [vmem:[%s7 + $0x78] sm:$0xff]
  %v597 = vld [vmem:[%s8] sm:$0x1]
  %v599 = vlaneseq
  %v600 = vshrl.u32 %v599, 7
  %v601 = vsub.s32 0, %v600
  %v602 = vrot.slane %v597, %v601
  %604 = vmatprep.subr.mxu0 0.0
  %605 = vmatpush1.msra.mxu0 %v581
  %606 = vmatprep.subr.mxu0 0.0
  %607 = vmatpush1.msra.mxu0 %v582
  %608 = vmatprep.subr.mxu0 0.0
  %609 = vmatpush1.msra.mxu0 %v583
  %610 = vmatprep.subr.mxu0 0.0
  %611 = vmatpush1.msra.mxu0 %v584
  %612 = vmatprep.subr.mxu0 0.0
  %613 = vmatpush1.msra.mxu0 %v585
  %614 = vmatprep.subr.mxu0 0.0
  %615 = vmatpush1.msra.mxu0 %v586
  %616 = vmatprep.subr.mxu0 0.0
  %617 = vmatpush1.msra.mxu0 %v587
  %618 = vmatprep.subr.mxu0 0.0
  %619 = vmatpush1.msra.mxu0 %v588
  %620 = vmatprep.subr.mxu0 0.0
  %621 = vmatpush1.msra.mxu0 %v589
  %622 = vmatprep.subr.mxu0 0.0
  %623 = vmatpush1.msra.mxu0 %v590
  %624 = vmatprep.subr.mxu0 0.0
  %625 = vmatpush1.msra.mxu0 %v591
  %626 = vmatprep.subr.mxu0 0.0
  %627 = vmatpush1.msra.mxu0 %v592
  %628 = vmatprep.subr.mxu0 0.0
  %629 = vmatpush1.msra.mxu0 %v593
  %630 = vmatprep.subr.mxu0 0.0
  %631 = vmatpush1.msra.mxu0 %v594
  %632 = vmatprep.subr.mxu0 0.0
  %633 = vmatpush1.msra.mxu0 %v595
  %634 = vmatprep.subr.mxu0 0.0
  %635 = vmatpush1.msra.mxu0 %v596
  %636 = vmatprep.subr.mxu0 0.0
  %637 = vmatpush1.msra.mxu0 0.0
  %638 = vmatprep.subr.mxu0 0.0
  %639 = vmatpush1.msra.mxu0 0.0
  %640 = vmatprep.subr.mxu0 0.0
  %641 = vmatpush1.msra.mxu0 0.0
  %642 = vmatprep.subr.mxu0 0.0
  %643 = vmatpush1.msra.mxu0 0.0
  %644 = vmatprep.subr.mxu0 0.0
  %645 = vmatpush1.msra.mxu0 0.0
  %646 = vmatprep.subr.mxu0 0.0
  %647 = vmatpush1.msra.mxu0 0.0
  %648 = vmatprep.subr.mxu0 0.0
  %649 = vmatpush1.msra.mxu0 0.0
  %650 = vmatprep.subr.mxu0 0.0
  %651 = vmatpush1.msra.mxu0 0.0
  %652 = vmatprep.subr.mxu0 0.0
  %653 = vmatpush1.msra.mxu0 0.0
  %654 = vmatprep.subr.mxu0 0.0
  %655 = vmatpush1.msra.mxu0 0.0
  %656 = vmatprep.subr.mxu0 0.0
  %657 = vmatpush1.msra.mxu0 0.0
  %658 = vmatprep.subr.mxu0 0.0
  %659 = vmatpush1.msra.mxu0 0.0
  %660 = vmatprep.subr.mxu0 0.0
  %661 = vmatpush1.msra.mxu0 0.0
  %662 = vmatprep.subr.mxu0 0.0
  %663 = vmatpush1.msra.mxu0 0.0
  %664 = vmatprep.subr.mxu0 0.0
  %665 = vmatpush1.msra.mxu0 0.0
  %666 = vmatprep.subr.mxu0 0.0
  %667 = vmatpush1.msra.mxu0 0.0
  %668 = vmatprep.mubr.f32.mxu0 0.0
  %669 = vmatmul.mubr.f32.gmra.mrb[0].mxu0 %v579
  %v670 = vpop.f32.mrb[0].mxu0
  %v671 = vadd.f32 %v602, %v670
  %v672 = vpop.f32.mrb[0].mxu0
  %673 = vmatprep.mubr.f32.mxu0 0.0
  %674 = vmatmul.mubr.f32.gmra.mrb[0].mxu0 %v580
  %v675 = vpop.f32.mrb[0].mxu0
  %v676 = vadd.f32 %v602, %v675
  %v677 = vpop.f32.mrb[0].mxu0
  %678 = vdwg.mxu0
  %679 = vst [vmem:[%s10] sm:$0xff] %v671
  %680 = vst [vmem:[%s10 + $0x8] sm:$0xff] %v676
  %v681 = vmax.f32 %v671, %v676
  %v682 = vrot.slane %v681, 4
  %v683 = vmax.f32 %v681, %v682
  %v684 = vrot.slane %v683, 2
  %v685 = vmax.f32 %v683, %v684
  %v686 = vrot.slane %v685, 1
  %v687 = vmax.f32 %v685, %v686
  %688 = vst [vmem:[%s9] sm:$0x1] %v687
  // Predicated region
  $region38: #{deeper_mlp_forward.1} parent=0 // pred_check
    _
  $region39: #{deeper_mlp_forward.1} parent=0 // pred_check_branch
    %690 = sbr.rel (0) target = $region41
  $region40: #{deeper_mlp_forward.1} parent=0 // pred_region
    _
  $region41: #{deeper_mlp_forward.1} parent=0 // pred_fallthru
    _
  // Predicated region
  $region42: #{deeper_mlp_forward.1} parent=0 // pred_check
    _
  $region43: #{deeper_mlp_forward.1} parent=0 // pred_check_branch
    %692 = sbr.rel (0) target = $region45
  $region44: #{deeper_mlp_forward.1} parent=0 // pred_region
    _
  $region45: #{deeper_mlp_forward.1} parent=0 // pred_fallthru
    _
  // Predicated region
  $region46: #{deeper_mlp_forward.1} parent=0 // pred_check
    _
  $region47: #{deeper_mlp_forward.1} parent=0 // pred_check_branch
    %694 = sbr.rel (0) target = $region49
  $region48: #{deeper_mlp_forward.1} parent=0 // pred_region
    _
  $region49: #{deeper_mlp_forward.1} parent=0 // pred_fallthru
    _
  // Predicated region
  $region50: #{deeper_mlp_forward.1} parent=0 // pred_check
    _
  $region51: #{deeper_mlp_forward.1} parent=0 // pred_check_branch
    %696 = sbr.rel (0) target = $region53
  $region52: #{deeper_mlp_forward.1} parent=0 // pred_region
    _
  $region53: #{deeper_mlp_forward.1} parent=0 // pred_fallthru
    _

</llo_original>
